<compile_context>
chip_gen: v7x
topology: tpu7x:2x2x1
jax: 0.10.0
libtpu: 0.0.40
codegen_flags: <defaults>
</compile_context>

<pallas_src>
import math

import jax
import jax.numpy as jnp
from jax.experimental import pallas as pl
from jax.experimental.pallas import tpu as pltpu


def _dosage_add_kernel(tok_ref, pos_ref, out_ref):
    # tok_ref/out_ref: (TILE_S, B, E) VMEM blocks; pos_ref: (TILE_S, 1, E) VMEM block.
    # Pure VPU elementwise add, broadcasting the positional row over the batch axis.
    out_ref[...] = tok_ref[...] + pos_ref[...]


def _round_up(x: int, m: int) -> int:
    return ((x + m - 1) // m) * m


def _choose_tile_s(S: int, B: int, E: int, itemsize: int) -> int:
    """Sequence-tile size keeping double-buffered VMEM use to a few MiB."""
    e_pad = _round_up(E, 128)  # lane padding of the VMEM blocks
    # Per sequence-row bytes of one buffer set: token tile + out tile (B*E each)
    # plus the pos tile, pessimistically assuming its single sublane pads to 8.
    row_bytes = itemsize * (2 * B * e_pad + 8 * e_pad)
    budget_per_buffer_set = 6 * 1024 * 1024  # ~12 MiB total with double buffering
    tile = budget_per_buffer_set // max(row_bytes, 1)
    tile = max(8, (tile // 8) * 8)           # multiple of 8 rows, at least 8
    tile = min(tile, 1024)                   # cap per-step size
    tile = min(tile, _round_up(S, 8))        # never larger than (rounded) S
    return tile


def make_pos_embedding(emb_size: int = 50, maxlen: int = 5000, dtype=jnp.float32):
    """Deterministically build the sinusoidal table, matching the torch __init__."""
    assert emb_size % 2 == 0, "even emb_size (as required by the torch code path)"
    den = jnp.exp(
        -jnp.arange(0, emb_size, 2, dtype=jnp.float32) * (math.log(10000.0) / emb_size)
    )  # (E//2,)
    pos = jnp.arange(0, maxlen, dtype=jnp.float32).reshape(maxlen, 1)  # (maxlen, 1)
    angles = pos * den  # (maxlen, E//2)
    # Interleave: even columns = sin, odd columns = cos (matches 0::2 / 1::2 assignment).
    pe = jnp.stack([jnp.sin(angles), jnp.cos(angles)], axis=-1)  # (maxlen, E//2, 2)
    pe = pe.reshape(maxlen, emb_size).astype(dtype)
    return pe  # (maxlen, E)


def dosage_encoding(token_embedding: jax.Array, pos_embedding: jax.Array,
                    *, tile_s: int | None = None) -> jax.Array:
    """Forward pass: token_embedding + pos_embedding[:S] (broadcast over batch).

    token_embedding: (S, B, E)
    pos_embedding:   (maxlen, E) with maxlen >= S
    returns:         (S, B, E)   (Dropout(p=0.0) in the reference module is identity.)
    """
    S, B, E = token_embedding.shape
    maxlen, e_tab = pos_embedding.shape
    assert e_tab == E and maxlen >= S
    dtype = token_embedding.dtype

    # Free metadata reshape to the PyTorch buffer layout (maxlen, 1, E); the BlockSpec
    # below windows this table directly, so no [:S] slice copy is ever materialized.
    pos3 = pos_embedding.reshape(maxlen, 1, E)
    if pos3.dtype != dtype:
        pos3 = pos3.astype(dtype)

    if tile_s is None:
        tile_s = _choose_tile_s(S, B, E, jnp.dtype(dtype).itemsize)
    grid = (pl.cdiv(S, tile_s),)

    return pl.pallas_call(
        _dosage_add_kernel,
        out_shape=jax.ShapeDtypeStruct((S, B, E), dtype),
        grid=grid,
        in_specs=[
            # Token/output blocks keep (B, E) full (legal: block dims == array dims)
            # and tile only the sequence axis -> pipelined DMA over S.
            pl.BlockSpec((tile_s, B, E), lambda i: (i, 0, 0)),
            # Positional table windowed per sequence block; broadcast over B happens
            # inside the kernel, never in HBM.
            pl.BlockSpec((tile_s, 1, E), lambda i: (i, 0, 0)),
        ],
        out_specs=pl.BlockSpec((tile_s, B, E), lambda i: (i, 0, 0)),
        compiler_params=pltpu.CompilerParams(
            # Independent row blocks: shard across both TensorCores on v7x.
            dimension_semantics=("parallel",),
        ),
    )(token_embedding, pos3)


if __name__ == "__main__":
    key = jax.random.PRNGKey(0)
    k1, k2 = jax.random.split(key)

    # Case 1: small module-like shapes (seq-first): seq=8, batch=2, emb=32, maxlen=64.
    S, B, E, MAXLEN = 8, 2, 32, 64
    tok1 = jax.random.normal(k1, (S, B, E), dtype=jnp.float32)
    pos1 = make_pos_embedding(emb_size=E, maxlen=MAXLEN)
    out1 = jax.block_until_ready(dosage_encoding(tok1, pos1))
    ref1 = tok1 + pos1[:S][:, None, :]
    assert out1.shape == (S, B, E)
    assert jnp.allclose(out1, ref1, atol=1e-6, rtol=1e-6)

    # Case 2: forced multi-step grid (tile_s=16, 3 blocks, partial last block) with a
    # lane-dense emb_size=128 — exercises the pipelined/tiled path and edge masking.
    S2, B2, E2, MAXLEN2 = 40, 4, 128, 64
    tok2 = jax.random.normal(k2, (S2, B2, E2), dtype=jnp.float32)
    pos2 = make_pos_embedding(emb_size=E2, maxlen=MAXLEN2)
    out2 = jax.block_until_ready(dosage_encoding(tok2, pos2, tile_s=16))
    ref2 = tok2 + pos2[:S2][:, None, :]
    assert out2.shape == (S2, B2, E2)
    assert jnp.allclose(out2, ref2, atol=1e-6, rtol=1e-6)

    print("KERNEL_OK")
</pallas_src>

<mosaic_0001>
module attributes {stable_mosaic.version = 11 : i64} {
  func.func @_dosage_add_kernel(%arg0: i32, %arg1: memref<8x2x32xf32, #tpu.memory_space<vmem>>, %arg2: memref<8x1x32xf32, #tpu.memory_space<vmem>>, %arg3: memref<8x2x32xf32, #tpu.memory_space<vmem>>) attributes {dimension_semantics = [#tpu.dimension_semantics<parallel>], iteration_bounds = array<i64: 1>, scalar_prefetch = 0 : i64, scratch_operands = 0 : i64, tpu.core_type = #tpu.core_type<tc>, window_params = [{transform_indices = @transform_0, window_bounds = array<i64: 8, 2, 32>}, {transform_indices = @transform_1, window_bounds = array<i64: 8, 1, 32>}, {transform_indices = @transform_2, window_bounds = array<i64: 8, 2, 32>}]} {
    %c0 = arith.constant 0 : index
    %c0_0 = arith.constant 0 : index
    %c0_1 = arith.constant 0 : index
    %0 = vector.load %arg1[%c0, %c0_0, %c0_1] : memref<8x2x32xf32, #tpu.memory_space<vmem>>, vector<8x2x32xf32>
    %c0_2 = arith.constant 0 : index
    %c0_3 = arith.constant 0 : index
    %c0_4 = arith.constant 0 : index
    %1 = vector.load %arg2[%c0_2, %c0_3, %c0_4] : memref<8x1x32xf32, #tpu.memory_space<vmem>>, vector<8x1x32xf32>
    %2 = vector.broadcast %1 : vector<8x1x32xf32> to vector<8x2x32xf32>
    %3 = arith.addf %0, %2 : vector<8x2x32xf32>
    %c0_5 = arith.constant 0 : index
    %c0_6 = arith.constant 0 : index
    %c0_7 = arith.constant 0 : index
    %4 = vector.load %arg3[%c0_5, %c0_6, %c0_7] : memref<8x2x32xf32, #tpu.memory_space<vmem>>, vector<8x2x32xf32>
    tpu.vector_store %arg3[%c0_5, %c0_6, %c0_7], %3 {strides = array<i32>} : memref<8x2x32xf32, #tpu.memory_space<vmem>>, vector<8x2x32xf32>,
    return
  }
  func.func @transform_0(%arg0: i32) -> (i32, i32, i32) {
    %c0_i32 = arith.constant 0 : i32
    %c0_i32_0 = arith.constant 0 : i32
    %c0_i32_1 = arith.constant 0 : i32
    return %arg0, %c0_i32, %c0_i32_0 : i32, i32, i32
  }
  func.func @transform_1(%arg0: i32) -> (i32, i32, i32) {
    %c0_i32 = arith.constant 0 : i32
    %c0_i32_0 = arith.constant 0 : i32
    %c0_i32_1 = arith.constant 0 : i32
    return %arg0, %c0_i32, %c0_i32_0 : i32, i32, i32
  }
  func.func @transform_2(%arg0: i32) -> (i32, i32, i32) {
    %c0_i32 = arith.constant 0 : i32
    %c0_i32_0 = arith.constant 0 : i32
    %c0_i32_1 = arith.constant 0 : i32
    return %arg0, %c0_i32, %c0_i32_0 : i32, i32, i32
  }
}

</mosaic_0001>

<llo_original>
// kernel: tpu_custom_call.1
$region0: #{tpu_custom_call.1}
  #allocation0 [shape = 'u32[]', space=smem, size = 0x4, offset = 0x4, fixed_abs, tag = 'smem constant byte address 0x4 - core index']
  #allocation1 [shape = 'u32[144,128]{1,0:T(1,128)}', space=vmem, size = 0x12000, scoped, tag = 'internal scratch']
  %s0 = inlined_call_operand.vmem [shape: f32[8,2,32], index: 0, kind: input, shape index: {}]
  %s1 = inlined_call_operand.vmem [shape: f32[64,1,32], index: 1, kind: input, shape index: {}]
  %s2 = inlined_call_operand.hbm [shape: f32[8,2,32], index: 2, kind: output, shape index: {}]
  %s3 = sld [smem:[#allocation0]]
  $region18: #{tpu_custom_call.1} parent=0
    _
  %s5 = ssub.s32 1, %s3
  %s6 = scalar_select 0, %s5, %s3
  $region1: #{tpu_custom_call.1} parent=0
    #allocation2 [shape = 'u8[8192]{0}', space=vmem, size = 0x2000, scoped, tag = 'output window, operand 0, single buffered']
    #allocation3 [shape = 's32[1]{0}', space=sflag, size = 0x4, scoped, tag = 'scoped memory for tpu_custom_call.1']
    %7 = vsyncpa [#allocation3], 0
    // Predicated region
    $region2: #{tpu_custom_call.1} parent=1 // pred_check
      _
    $region3: #{tpu_custom_call.1} parent=1 // pred_check_branch
      %9 = sbr.rel (0) target = $region5
    $region4: #{tpu_custom_call.1} parent=1 // pred_region
      _
    $region5: #{tpu_custom_call.1} parent=1 // pred_fallthru
      _
    // Predicated region
    $region6: #{tpu_custom_call.1} parent=1 // pred_check
      _
    $region7: #{tpu_custom_call.1} parent=1 // pred_check_branch
      %11 = sbr.rel (0) target = $region9
    $region8: #{tpu_custom_call.1} parent=1 // pred_region
      _
    $region9: #{tpu_custom_call.1} parent=1 // pred_fallthru
      _
    %v12 = vld [vmem:[%s0] sm:$0x3]
    %v13 = vld [vmem:[%s0 + $0x2] sm:$0x3]
    %v14 = vld [vmem:[%s0 + $0x4] sm:$0x3]
    %v15 = vld [vmem:[%s0 + $0x6] sm:$0x3]
    %v16 = vld [vmem:[%s0 + $0x8] sm:$0x3]
    %v17 = vld [vmem:[%s0 + $0xa] sm:$0x3]
    %v18 = vld [vmem:[%s0 + $0xc] sm:$0x3]
    %v19 = vld [vmem:[%s0 + $0xe] sm:$0x3]
    %v20 = vld [vmem:[%s1] sm:$0x1]
    %v21 = vld [vmem:[%s1 + $0x1] sm:$0x1]
    %v22 = vld [vmem:[%s1 + $0x2] sm:$0x1]
    %v23 = vld [vmem:[%s1 + $0x3] sm:$0x1]
    %v24 = vld [vmem:[%s1 + $0x4] sm:$0x1]
    %v25 = vld [vmem:[%s1 + $0x5] sm:$0x1]
    %v26 = vld [vmem:[%s1 + $0x6] sm:$0x1]
    %v27 = vld [vmem:[%s1 + $0x7] sm:$0x1]
    %v36 = vlaneseq
    %v37 = vshrl.u32 %v36, 7
    %v38 = vsub.s32 0, %v37
    %v39 = vrot.slane %v20, %v38
    %v40 = vlaneseq
    %v41 = vshrl.u32 %v40, 7
    %v42 = vsub.s32 0, %v41
    %v43 = vrot.slane %v21, %v42
    %v44 = vlaneseq
    %v45 = vshrl.u32 %v44, 7
    %v46 = vsub.s32 0, %v45
    %v47 = vrot.slane %v22, %v46
    %v48 = vlaneseq
    %v49 = vshrl.u32 %v48, 7
    %v50 = vsub.s32 0, %v49
    %v51 = vrot.slane %v23, %v50
    %v52 = vlaneseq
    %v53 = vshrl.u32 %v52, 7
    %v54 = vsub.s32 0, %v53
    %v55 = vrot.slane %v24, %v54
    %v56 = vlaneseq
    %v57 = vshrl.u32 %v56, 7
    %v58 = vsub.s32 0, %v57
    %v59 = vrot.slane %v25, %v58
    %v60 = vlaneseq
    %v61 = vshrl.u32 %v60, 7
    %v62 = vsub.s32 0, %v61
    %v63 = vrot.slane %v26, %v62
    %v64 = vlaneseq
    %v65 = vshrl.u32 %v64, 7
    %v66 = vsub.s32 0, %v65
    %v67 = vrot.slane %v27, %v66
    %v76 = vadd.f32 %v12, %v39
    %v77 = vadd.f32 %v13, %v43
    %v78 = vadd.f32 %v14, %v47
    %v79 = vadd.f32 %v15, %v51
    %v80 = vadd.f32 %v16, %v55
    %v81 = vadd.f32 %v17, %v59
    %v82 = vadd.f32 %v18, %v63
    %v83 = vadd.f32 %v19, %v67
    %vm84 = vcmask 254976
    %85 = vst.msk [vmem:[#allocation2] sm:$0x3] %vm84, %v76
    %86 = vst.msk [vmem:[#allocation2 + $0x2] sm:$0x3] %vm84, %v77
    %87 = vst.msk [vmem:[#allocation2 + $0x4] sm:$0x3] %vm84, %v78
    %88 = vst.msk [vmem:[#allocation2 + $0x6] sm:$0x3] %vm84, %v79
    %89 = vst.msk [vmem:[#allocation2 + $0x8] sm:$0x3] %vm84, %v80
    %90 = vst.msk [vmem:[#allocation2 + $0xa] sm:$0x3] %vm84, %v81
    %91 = vst.msk [vmem:[#allocation2 + $0xc] sm:$0x3] %vm84, %v82
    %92 = vst.msk [vmem:[#allocation2 + $0xe] sm:$0x3] %vm84, %v83
    // Predicated region
    $region10: #{tpu_custom_call.1} parent=1 // pred_check
      _
    $region11: #{tpu_custom_call.1} parent=1 // pred_check_branch
      %94 = sbr.rel (0) target = $region13
    $region12: #{tpu_custom_call.1} parent=1 // pred_region
      %s96 = ssub.s32 256, 256
      %97 = vsyncadd [#allocation3], %s96
      %s98 = sshll.u32 [#allocation2], 4
      %s99 = int_to_ptr.vmem [resolvable:$true] %s98
      %104 = dma.vmem_to_hbm [thread:$0]  %s99, 256, %s2, [#allocation3], 32, 32, 2
    $region13: #{tpu_custom_call.1} parent=1 // pred_fallthru
      _
    // Predicated region
    $region14: #{tpu_custom_call.1} parent=1 // pred_check
      _
    $region15: #{tpu_custom_call.1} parent=1 // pred_check_branch
      %106 = sbr.rel (0) target = $region17
    $region16: #{tpu_custom_call.1} parent=1 // pred_region
      %107 = dma.done [#allocation3], 256
    $region17: #{tpu_custom_call.1} parent=1 // pred_fallthru
      _
    %108 = vsyncpa [#allocation3], 1

</llo_original>
